<compile_context>
chip_gen: v6e
topology: v6e:2x2x1
jax: 0.10.0
libtpu: 0.0.40
codegen_flags: <defaults>
</compile_context>

<pallas_src>
import functools

import jax
import jax.numpy as jnp
from jax import lax
from jax.experimental import pallas as pl
from jax.experimental.pallas import tpu as pltpu


def _round_up(x, m):
    return ((x + m - 1) // m) * m


def _dynamic_net_kernel(x_ref, w_in_ref, b_in_ref, w_mid_ref, b_mid_ref,
                        w_out_ref, b_out_ref, y_ref, *, n_hidden):
    """Fused forward: inputLinear+ReLU, N_H x (middleLinear+ReLU), outputLinear.

    x_ref:     (TILE_B, D_in)   one batch tile, true (unpadded) feature width
    w_in_ref:  (D_in, P_h)      resident, zero-padded output columns
    b_in_ref:  (1, P_h)         f32
    w_mid_ref: (P_h, P_h)       resident
    b_mid_ref: (1, P_h)         f32
    w_out_ref: (P_h, P_out)     resident
    b_out_ref: (1, P_out)       f32
    y_ref:     (TILE_B, P_out)  lane-dense padded output tile
    """
    cdt = w_in_ref.dtype                     # matmul input dtype (f32 or bf16)

    x = x_ref[...].astype(cdt)
    b_in = b_in_ref[...]                     # (1, P_h)  implicit broadcast
    b_mid = b_mid_ref[...]                   # (1, P_h)  implicit broadcast
    b_out = b_out_ref[...]                   # (1, P_out)
    w_mid = w_mid_ref[...]

    # inputLinear + clamp(min=0) (== ReLU). Accumulate in f32 on the MXU.
    h = jnp.dot(x, w_in_ref[...], preferred_element_type=jnp.float32) + b_in
    h = jnp.maximum(h, 0.0)

    # N_H applications of the *same* middleLinear weights + ReLU.
    def body(_, h_carry):
        h_new = jnp.dot(h_carry.astype(cdt), w_mid,
                        preferred_element_type=jnp.float32) + b_mid
        return jnp.maximum(h_new, 0.0)

    if n_hidden > 0:
        h = lax.fori_loop(0, n_hidden, body, h,
                          unroll=min(int(n_hidden), 4))

    # outputLinear (no activation). Lane-dense (P_out-wide) store.
    y_ref[...] = (jnp.dot(h.astype(cdt), w_out_ref[...],
                          preferred_element_type=jnp.float32)
                  + b_out).astype(y_ref.dtype)


def pad_params(params, *, param_dtype=jnp.float32):
    """Zero-pad params to per-layer lane-dense widths. Call ONCE at init.

    Returns a dict of padded arrays plus the true output width under "d_out".
    Zero padding is mathematically inert: padded weight rows/cols and padded
    bias entries are zero, and ReLU(0) = 0, so padded lanes stay exactly zero
    through every layer.
    """
    w_in, w_mid, w_out = params["w_in"], params["w_mid"], params["w_out"]
    d_in, d_h = w_in.shape
    d_out = int(w_out.shape[1])
    p_h = _round_up(d_h, 128)
    p_out = _round_up(d_out, 128)

    def padw(w, rows, cols):
        out = jnp.zeros((rows, cols), param_dtype)
        return out.at[:w.shape[0], :w.shape[1]].set(w.astype(param_dtype))

    def padb(b, cols):
        out = jnp.zeros((1, cols), jnp.float32)
        return out.at[0, :b.size].set(b.reshape(-1).astype(jnp.float32))

    return dict(
        w_in=padw(w_in, d_in, p_h),
        w_mid=padw(w_mid, p_h, p_h),
        w_out=padw(w_out, p_h, p_out),
        b_in=padb(params["b_in"], p_h),
        b_mid=padb(params["b_mid"], p_h),
        b_out=padb(params["b_out"], p_out),
        d_out=d_out,
    )


def dynamic_net_forward(x, padded_params, n_hidden, *, tile_b=512,
                        trim_output=True):
    """Run the fused Pallas kernel.

    x:             (B, D_in) float32, passed to the kernel unpadded.
    padded_params: output of pad_params() (padded once, at init time).
    """
    n_hidden = int(n_hidden)
    B, D_in = x.shape
    p = padded_params
    assert p["w_in"].shape[0] == D_in, "w_in fan_in must match x feature dim"
    P_h = p["w_mid"].shape[0]
    P_out = p["w_out"].shape[1]

    # Batch tile: multiple of 8, capped at tile_b, and split so the grid has
    # >= 2 steps whenever B allows it (keeps both v7x TensorCores fed and
    # gives the x/y streams something to pipeline against).
    if B <= 8:
        TILE_B = B                      # single block equal to the full batch
    else:
        TILE_B = max(8, (min(int(tile_b), B) // 8) * 8)
        while pl.cdiv(B, TILE_B) < 2 and TILE_B > 8:
            TILE_B = max(8, ((TILE_B // 2 + 7) // 8) * 8)
    grid = (pl.cdiv(B, TILE_B),)

    # VMEM budget: weights/biases get 2 pipeline buffers each (constant
    # index_map -> DMA'd only once, but buffers are still allocated) plus
    # double-buffered x/y tiles.
    w_itemsize = jnp.dtype(p["w_in"].dtype).itemsize
    w_bytes = w_itemsize * (D_in * P_h + P_h * P_h + P_h * P_out)
    b_bytes = 4 * (2 * P_h + P_out)
    xy_tile_bytes = 4 * TILE_B * (D_in + P_out)
    vmem_needed = 2 * (w_bytes + b_bytes) + 2 * xy_tile_bytes + (2 << 20)
    vmem_limit = int(min(max(vmem_needed, 32 << 20), 64 << 20))

    flops = 2 * B * (D_in * P_h + n_hidden * P_h * P_h + P_h * P_out)
    bytes_accessed = 4 * B * (D_in + P_out) + w_bytes + b_bytes
    cost = pl.CostEstimate(flops=flops, transcendentals=0,
                           bytes_accessed=bytes_accessed)

    y_pad = pl.pallas_call(
        functools.partial(_dynamic_net_kernel, n_hidden=n_hidden),
        out_shape=jax.ShapeDtypeStruct((B, P_out), jnp.float32),
        grid=grid,
        in_specs=[
            pl.BlockSpec((TILE_B, D_in), lambda i: (i, 0)),   # x: batch-streamed
            pl.BlockSpec((D_in, P_h),    lambda i: (0, 0)),   # w_in: resident
            pl.BlockSpec((1, P_h),       lambda i: (0, 0)),   # b_in
            pl.BlockSpec((P_h, P_h),     lambda i: (0, 0)),   # w_mid: resident
            pl.BlockSpec((1, P_h),       lambda i: (0, 0)),   # b_mid
            pl.BlockSpec((P_h, P_out),   lambda i: (0, 0)),   # w_out: resident
            pl.BlockSpec((1, P_out),     lambda i: (0, 0)),   # b_out
        ],
        out_specs=pl.BlockSpec((TILE_B, P_out), lambda i: (i, 0)),
        compiler_params=pltpu.CompilerParams(
            dimension_semantics=("parallel",),   # dual-TC sharding on v7x
            vmem_limit_bytes=vmem_limit),
        cost_estimate=cost,
    )(x, p["w_in"], p["b_in"], p["w_mid"], p["b_mid"], p["w_out"], p["b_out"])

    if trim_output:
        return y_pad[:, :int(p["d_out"])]
    return y_pad   # padded width; extra lanes are exactly zero


def init_params(key, d_in, d_h, d_out):
    """Deterministic init mimicking torch.nn.Linear's U(-1/sqrt(fan_in), ...)."""
    ks = jax.random.split(key, 6)

    def linear(kw, kb, fan_in, fan_out):
        bound = 1.0 / jnp.sqrt(jnp.float32(fan_in))
        # stored as (fan_in, fan_out) so the kernel computes x @ W + b
        w = jax.random.uniform(kw, (fan_in, fan_out), jnp.float32, -bound, bound)
        b = jax.random.uniform(kb, (1, fan_out), jnp.float32, -bound, bound)
        return w, b

    w_in, b_in = linear(ks[0], ks[1], d_in, d_h)
    w_mid, b_mid = linear(ks[2], ks[3], d_h, d_h)
    w_out, b_out = linear(ks[4], ks[5], d_h, d_out)
    return dict(w_in=w_in, b_in=b_in, w_mid=w_mid, b_mid=b_mid,
                w_out=w_out, b_out=b_out)


def reference_forward(x, params, n_hidden):
    h = jnp.maximum(x @ params["w_in"] + params["b_in"], 0.0)
    for _ in range(n_hidden):
        h = jnp.maximum(h @ params["w_mid"] + params["b_mid"], 0.0)
    return h @ params["w_out"] + params["b_out"]


if __name__ == "__main__":
    # Small shapes consistent with DynamicNet(D_in, D_H, N_H, D_out)
    B, D_in, D_H, N_H, D_out = 8, 16, 32, 3, 8

    key = jax.random.PRNGKey(0)
    k_x, k_p = jax.random.split(key)
    x = jax.random.normal(k_x, (B, D_in), jnp.float32)
    params = init_params(k_p, D_in, D_H, D_out)
    padded = pad_params(params)          # padded ONCE, outside the forward path

    y = dynamic_net_forward(x, padded, N_H)
    y = jax.block_until_ready(y)

    y_ref = reference_forward(x, params, N_H)
    assert y.shape == (B, D_out)
    assert jnp.allclose(y, y_ref, atol=1e-4, rtol=1e-4), "mismatch vs JAX reference"

    print("KERNEL_OK")
</pallas_src>

<mosaic_0001>
module attributes {stable_mosaic.version = 11 : i64} {
  func.func @_dynamic_net_kernel(%arg0: i32, %arg1: memref<8x16xf32, #tpu.memory_space<vmem>>, %arg2: memref<16x128xf32, #tpu.memory_space<vmem>>, %arg3: memref<1x128xf32, #tpu.memory_space<vmem>>, %arg4: memref<128x128xf32, #tpu.memory_space<vmem>>, %arg5: memref<1x128xf32, #tpu.memory_space<vmem>>, %arg6: memref<128x128xf32, #tpu.memory_space<vmem>>, %arg7: memref<1x128xf32, #tpu.memory_space<vmem>>, %arg8: memref<8x128xf32, #tpu.memory_space<vmem>>) attributes {dimension_semantics = [#tpu.dimension_semantics<parallel>], iteration_bounds = array<i64: 1>, scalar_prefetch = 0 : i64, scratch_operands = 0 : i64, tpu.core_type = #tpu.core_type<tc>, window_params = [{transform_indices = @transform_0, window_bounds = array<i64: 8, 16>}, {pipeline_mode = #tpu.pipeline_mode<synchronous>, transform_indices = @transform_1, window_bounds = array<i64: 16, 128>}, {pipeline_mode = #tpu.pipeline_mode<synchronous>, transform_indices = @transform_2, window_bounds = array<i64: 1, 128>}, {pipeline_mode = #tpu.pipeline_mode<synchronous>, transform_indices = @transform_3, window_bounds = array<i64: 128, 128>}, {pipeline_mode = #tpu.pipeline_mode<synchronous>, transform_indices = @transform_4, window_bounds = array<i64: 1, 128>}, {pipeline_mode = #tpu.pipeline_mode<synchronous>, transform_indices = @transform_5, window_bounds = array<i64: 128, 128>}, {pipeline_mode = #tpu.pipeline_mode<synchronous>, transform_indices = @transform_6, window_bounds = array<i64: 1, 128>}, {transform_indices = @transform_7, window_bounds = array<i64: 8, 128>}]} {
    %c0 = arith.constant 0 : index
    %c0_0 = arith.constant 0 : index
    %0 = vector.load %arg1[%c0, %c0_0] : memref<8x16xf32, #tpu.memory_space<vmem>>, vector<8x16xf32>
    %c0_1 = arith.constant 0 : index
    %c0_2 = arith.constant 0 : index
    %1 = vector.load %arg3[%c0_1, %c0_2] : memref<1x128xf32, #tpu.memory_space<vmem>>, vector<1x128xf32>
    %c0_3 = arith.constant 0 : index
    %c0_4 = arith.constant 0 : index
    %2 = vector.load %arg5[%c0_3, %c0_4] : memref<1x128xf32, #tpu.memory_space<vmem>>, vector<1x128xf32>
    %c0_5 = arith.constant 0 : index
    %c0_6 = arith.constant 0 : index
    %3 = vector.load %arg7[%c0_5, %c0_6] : memref<1x128xf32, #tpu.memory_space<vmem>>, vector<1x128xf32>
    %c0_7 = arith.constant 0 : index
    %c0_8 = arith.constant 0 : index
    %4 = vector.load %arg4[%c0_7, %c0_8] : memref<128x128xf32, #tpu.memory_space<vmem>>, vector<128x128xf32>
    %c0_9 = arith.constant 0 : index
    %c0_10 = arith.constant 0 : index
    %5 = vector.load %arg2[%c0_9, %c0_10] : memref<16x128xf32, #tpu.memory_space<vmem>>, vector<16x128xf32>
    %cst = arith.constant dense<0.000000e+00> : vector<8x128xf32>
    %6 = tpu.matmul %0, %5, %cst {dimension_numbers = #tpu.dot_dimension_numbers<[1], [0], [0], [1], [0, 0, 1, 1], [], []>} : vector<8x16xf32>, vector<16x128xf32>, vector<8x128xf32> -> vector<8x128xf32>
    %7 = vector.broadcast %1 : vector<1x128xf32> to vector<8x128xf32>
    %8 = arith.addf %6, %7 : vector<8x128xf32>
    %cst_11 = arith.constant 0.000000e+00 : f32
    %9 = vector.broadcast %cst_11 : f32 to vector<8x128xf32>
    %10 = arith.maximumf %8, %9 : vector<8x128xf32>
    %c0_i32 = arith.constant 0 : i32
    %cst_12 = arith.constant dense<0.000000e+00> : vector<8x128xf32>
    %11 = tpu.matmul %10, %4, %cst_12 {dimension_numbers = #tpu.dot_dimension_numbers<[1], [0], [0], [1], [0, 0, 1, 1], [], []>} : vector<8x128xf32>, vector<128x128xf32>, vector<8x128xf32> -> vector<8x128xf32>
    %12 = vector.broadcast %2 : vector<1x128xf32> to vector<8x128xf32>
    %13 = arith.addf %11, %12 : vector<8x128xf32>
    %cst_13 = arith.constant 0.000000e+00 : f32
    %14 = vector.broadcast %cst_13 : f32 to vector<8x128xf32>
    %15 = arith.maximumf %13, %14 : vector<8x128xf32>
    %c1_i32 = arith.constant 1 : i32
    %cst_14 = arith.constant dense<0.000000e+00> : vector<8x128xf32>
    %16 = tpu.matmul %15, %4, %cst_14 {dimension_numbers = #tpu.dot_dimension_numbers<[1], [0], [0], [1], [0, 0, 1, 1], [], []>} : vector<8x128xf32>, vector<128x128xf32>, vector<8x128xf32> -> vector<8x128xf32>
    %17 = vector.broadcast %2 : vector<1x128xf32> to vector<8x128xf32>
    %18 = arith.addf %16, %17 : vector<8x128xf32>
    %cst_15 = arith.constant 0.000000e+00 : f32
    %19 = vector.broadcast %cst_15 : f32 to vector<8x128xf32>
    %20 = arith.maximumf %18, %19 : vector<8x128xf32>
    %c2_i32 = arith.constant 2 : i32
    %cst_16 = arith.constant dense<0.000000e+00> : vector<8x128xf32>
    %21 = tpu.matmul %20, %4, %cst_16 {dimension_numbers = #tpu.dot_dimension_numbers<[1], [0], [0], [1], [0, 0, 1, 1], [], []>} : vector<8x128xf32>, vector<128x128xf32>, vector<8x128xf32> -> vector<8x128xf32>
    %22 = vector.broadcast %2 : vector<1x128xf32> to vector<8x128xf32>
    %23 = arith.addf %21, %22 : vector<8x128xf32>
    %cst_17 = arith.constant 0.000000e+00 : f32
    %24 = vector.broadcast %cst_17 : f32 to vector<8x128xf32>
    %25 = arith.maximumf %23, %24 : vector<8x128xf32>
    %c0_18 = arith.constant 0 : index
    %c0_19 = arith.constant 0 : index
    %26 = vector.load %arg6[%c0_18, %c0_19] : memref<128x128xf32, #tpu.memory_space<vmem>>, vector<128x128xf32>
    %cst_20 = arith.constant dense<0.000000e+00> : vector<8x128xf32>
    %27 = tpu.matmul %25, %26, %cst_20 {dimension_numbers = #tpu.dot_dimension_numbers<[1], [0], [0], [1], [0, 0, 1, 1], [], []>} : vector<8x128xf32>, vector<128x128xf32>, vector<8x128xf32> -> vector<8x128xf32>
    %28 = vector.broadcast %3 : vector<1x128xf32> to vector<8x128xf32>
    %29 = arith.addf %27, %28 : vector<8x128xf32>
    %c0_21 = arith.constant 0 : index
    %c0_22 = arith.constant 0 : index
    %30 = vector.load %arg8[%c0_21, %c0_22] : memref<8x128xf32, #tpu.memory_space<vmem>>, vector<8x128xf32>
    tpu.vector_store %arg8[%c0_21, %c0_22], %29 {strides = array<i32>} : memref<8x128xf32, #tpu.memory_space<vmem>>, vector<8x128xf32>,
    return
  }
  func.func @transform_0(%arg0: i32) -> (i32, i32) {
    %c0_i32 = arith.constant 0 : i32
    %c0_i32_0 = arith.constant 0 : i32
    return %arg0, %c0_i32 : i32, i32
  }
  func.func @transform_1(%arg0: i32) -> (i32, i32) {
    %c0_i32 = arith.constant 0 : i32
    %c0_i32_0 = arith.constant 0 : i32
    %c0_i32_1 = arith.constant 0 : i32
    return %c0_i32, %c0_i32_0 : i32, i32
  }
  func.func @transform_2(%arg0: i32) -> (i32, i32) {
    %c0_i32 = arith.constant 0 : i32
    %c0_i32_0 = arith.constant 0 : i32
    %c0_i32_1 = arith.constant 0 : i32
    return %c0_i32, %c0_i32_0 : i32, i32
  }
  func.func @transform_3(%arg0: i32) -> (i32, i32) {
    %c0_i32 = arith.constant 0 : i32
    %c0_i32_0 = arith.constant 0 : i32
    %c0_i32_1 = arith.constant 0 : i32
    return %c0_i32, %c0_i32_0 : i32, i32
  }
  func.func @transform_4(%arg0: i32) -> (i32, i32) {
    %c0_i32 = arith.constant 0 : i32
    %c0_i32_0 = arith.constant 0 : i32
    %c0_i32_1 = arith.constant 0 : i32
    return %c0_i32, %c0_i32_0 : i32, i32
  }
  func.func @transform_5(%arg0: i32) -> (i32, i32) {
    %c0_i32 = arith.constant 0 : i32
    %c0_i32_0 = arith.constant 0 : i32
    %c0_i32_1 = arith.constant 0 : i32
    return %c0_i32, %c0_i32_0 : i32, i32
  }
  func.func @transform_6(%arg0: i32) -> (i32, i32) {
    %c0_i32 = arith.constant 0 : i32
    %c0_i32_0 = arith.constant 0 : i32
    %c0_i32_1 = arith.constant 0 : i32
    return %c0_i32, %c0_i32_0 : i32, i32
  }
  func.func @transform_7(%arg0: i32) -> (i32, i32) {
    %c0_i32 = arith.constant 0 : i32
    %c0_i32_0 = arith.constant 0 : i32
    return %arg0, %c0_i32 : i32, i32
  }
}

</mosaic_0001>

<llo_original>
// kernel: tpu_custom_call.1
$region0: #{tpu_custom_call.1}
  #allocation0 [shape = 'u32[]', space=smem, size = 0x4, offset = 0x4, fixed_abs, tag = 'smem constant byte address 0x4 - core index']
  #allocation1 [shape = 'u32[144,128]{1,0:T(1,128)}', space=vmem, size = 0x12000, scoped, tag = 'internal scratch']
  %s0 = inlined_call_operand.hbm [shape: f32[8,16], index: 0, kind: input, shape index: {}]
  %s1 = inlined_call_operand.hbm [shape: f32[16,128], index: 1, kind: input, shape index: {}]
  %s2 = inlined_call_operand.vmem [shape: f32[1,128], index: 2, kind: input, shape index: {}]
  %s3 = inlined_call_operand.hbm [shape: f32[128,128], index: 3, kind: input, shape index: {}]
  %s4 = inlined_call_operand.vmem [shape: f32[1,128], index: 4, kind: input, shape index: {}]
  %s5 = inlined_call_operand.hbm [shape: f32[128,128], index: 5, kind: input, shape index: {}]
  %s6 = inlined_call_operand.vmem [shape: f32[1,128], index: 6, kind: input, shape index: {}]
  %s7 = inlined_call_operand.hbm [shape: f32[8,128], index: 7, kind: output, shape index: {}]
  %s8 = sld [smem:[#allocation0]]
  $region54: #{tpu_custom_call.1} parent=0
    _
  %s10 = ssub.s32 1, %s8
  %s11 = scalar_select 0, %s10, %s8
  $region1: #{tpu_custom_call.1} parent=0
    #allocation2 [shape = 'u8[4096]{0}', space=vmem, size = 0x1000, scoped, tag = 'input window, operand 0, single buffered']
    #allocation3 [shape = 's32[1]{0}', space=sflag, size = 0x4, scoped, tag = 'scoped memory for tpu_custom_call.1']
    #allocation4 [shape = 's32[1]{0}', space=sflag, size = 0x4, scoped, tag = 'scoped memory for tpu_custom_call.1']
    #allocation5 [shape = 'u8[8192]{0}', space=vmem, size = 0x2000, scoped, tag = 'input window, operand 1, single buffered']
    #allocation6 [shape = 's32[1]{0}', space=sflag, size = 0x4, scoped, tag = 'scoped memory for tpu_custom_call.1']
    #allocation7 [shape = 'u8[65536]{0}', space=vmem, size = 0x10000, scoped, tag = 'input window, operand 3, single buffered']
    #allocation8 [shape = 'u8[65536]{0}', space=vmem, size = 0x10000, scoped, tag = 'input window, operand 5, single buffered']
    #allocation9 [shape = 's32[1]{0}', space=sflag, size = 0x4, scoped, tag = 'scoped memory for tpu_custom_call.1']
    #allocation10 [shape = 'u8[4096]{0}', space=vmem, size = 0x1000, scoped, tag = 'output window, operand 0, single buffered']
    %12 = vsyncpa [#allocation3], 0
    %13 = vsyncpa [#allocation6], 0
    %14 = vsyncpa [#allocation9], 0
    %15 = vsyncpa [#allocation4], 0
    // Predicated region
    $region2: #{tpu_custom_call.1} parent=1 // pred_check
      _
    $region3: #{tpu_custom_call.1} parent=1 // pred_check_branch
      %17 = sbr.rel (0) target = $region5
    $region4: #{tpu_custom_call.1} parent=1 // pred_region
      %s19 = ssub.s32 128, 128
      %20 = vsyncadd [#allocation3], %s19
      %s22 = sshll.u32 [#allocation2], 4
      %s23 = int_to_ptr.vmem [resolvable:$true] %s22
      %25 = dma.hbm_to_vmem [thread:$0]  %s0, 128, %s23, [#allocation3]
    $region5: #{tpu_custom_call.1} parent=1 // pred_fallthru
      _
    // Predicated region
    $region6: #{tpu_custom_call.1} parent=1 // pred_check
      _
    $region7: #{tpu_custom_call.1} parent=1 // pred_check_branch
      %27 = sbr.rel (0) target = $region9
    $region8: #{tpu_custom_call.1} parent=1 // pred_region
      %s29 = ssub.s32 256, 256
      %30 = vsyncadd [#allocation6], %s29
      %s31 = sshll.u32 [#allocation5], 4
      %s32 = int_to_ptr.vmem [resolvable:$true] %s31
      %37 = dma.hbm_to_vmem [thread:$0]  %s1, 256, %s32, [#allocation6], 128, 128, 8
    $region9: #{tpu_custom_call.1} parent=1 // pred_fallthru
      _
    // Predicated region
    $region10: #{tpu_custom_call.1} parent=1 // pred_check
      _
    $region11: #{tpu_custom_call.1} parent=1 // pred_check_branch
      %39 = sbr.rel (0) target = $region13
    $region12: #{tpu_custom_call.1} parent=1 // pred_region
      _
    $region13: #{tpu_custom_call.1} parent=1 // pred_fallthru
      _
    // Predicated region
    $region14: #{tpu_custom_call.1} parent=1 // pred_check
      _
    $region15: #{tpu_custom_call.1} parent=1 // pred_check_branch
      %41 = sbr.rel (0) target = $region17
    $region16: #{tpu_custom_call.1} parent=1 // pred_region
      %s43 = ssub.s32 2048, 2048
      %44 = vsyncadd [#allocation6], %s43
      %s45 = sshll.u32 [#allocation7], 4
      %s46 = int_to_ptr.vmem [resolvable:$true] %s45
      %51 = dma.hbm_to_vmem [thread:$0]  %s3, 2048, %s46, [#allocation6], 128, 128, 8
    $region17: #{tpu_custom_call.1} parent=1 // pred_fallthru
      _
    // Predicated region
    $region18: #{tpu_custom_call.1} parent=1 // pred_check
      _
    $region19: #{tpu_custom_call.1} parent=1 // pred_check_branch
      %53 = sbr.rel (0) target = $region21
    $region20: #{tpu_custom_call.1} parent=1 // pred_region
      _
    $region21: #{tpu_custom_call.1} parent=1 // pred_fallthru
      _
    // Predicated region
    $region22: #{tpu_custom_call.1} parent=1 // pred_check
      _
    $region23: #{tpu_custom_call.1} parent=1 // pred_check_branch
      %55 = sbr.rel (0) target = $region25
    $region24: #{tpu_custom_call.1} parent=1 // pred_region
      %s57 = ssub.s32 2048, 2048
      %58 = vsyncadd [#allocation9], %s57
      %s59 = sshll.u32 [#allocation8], 4
      %s60 = int_to_ptr.vmem [resolvable:$true] %s59
      %65 = dma.hbm_to_vmem [thread:$0]  %s5, 2048, %s60, [#allocation9], 128, 128, 8
    $region25: #{tpu_custom_call.1} parent=1 // pred_fallthru
      _
    // Predicated region
    $region26: #{tpu_custom_call.1} parent=1 // pred_check
      _
    $region27: #{tpu_custom_call.1} parent=1 // pred_check_branch
      %67 = sbr.rel (0) target = $region29
    $region28: #{tpu_custom_call.1} parent=1 // pred_region
      _
    $region29: #{tpu_custom_call.1} parent=1 // pred_fallthru
      _
    // Predicated region
    $region30: #{tpu_custom_call.1} parent=1 // pred_check
      _
    $region31: #{tpu_custom_call.1} parent=1 // pred_check_branch
      %69 = sbr.rel (0) target = $region33
    $region32: #{tpu_custom_call.1} parent=1 // pred_region
      %70 = dma.done [#allocation3], 128
    $region33: #{tpu_custom_call.1} parent=1 // pred_fallthru
      _
    // Predicated region
    $region34: #{tpu_custom_call.1} parent=1 // pred_check
      _
    $region35: #{tpu_custom_call.1} parent=1 // pred_check_branch
      %72 = sbr.rel (0) target = $region37
    $region36: #{tpu_custom_call.1} parent=1 // pred_region
      %73 = dma.done [#allocation6], 256
    $region37: #{tpu_custom_call.1} parent=1 // pred_fallthru
      _
    // Predicated region
    $region38: #{tpu_custom_call.1} parent=1 // pred_check
      _
    $region39: #{tpu_custom_call.1} parent=1 // pred_check_branch
      %75 = sbr.rel (0) target = $region41
    $region40: #{tpu_custom_call.1} parent=1 // pred_region
      %76 = dma.done [#allocation6], 2048
    $region41: #{tpu_custom_call.1} parent=1 // pred_fallthru
      _
    // Predicated region
    $region42: #{tpu_custom_call.1} parent=1 // pred_check
      _
    $region43: #{tpu_custom_call.1} parent=1 // pred_check_branch
      %78 = sbr.rel (0) target = $region45
    $region44: #{tpu_custom_call.1} parent=1 // pred_region
      %79 = dma.done [#allocation9], 2048
    $region45: #{tpu_custom_call.1} parent=1 // pred_fallthru
      _
    %v80 = vld [vmem:[#allocation2] sm:$0xff]
    %v81 = vld [vmem:[%s2] sm:$0x1]
    %v82 = vld [vmem:[%s4] sm:$0x1]
    %v83 = vld [vmem:[%s6] sm:$0x1]
    %v84 = vld [vmem:[#allocation7] sm:$0xff]
    %v85 = vld [vmem:[#allocation7 + $0x8] sm:$0xff]
    %v86 = vld [vmem:[#allocation7 + $0x10] sm:$0xff]
    %v87 = vld [vmem:[#allocation7 + $0x18] sm:$0xff]
    %v88 = vld [vmem:[#allocation7 + $0x20] sm:$0xff]
    %v89 = vld [vmem:[#allocation7 + $0x28] sm:$0xff]
    %v90 = vld [vmem:[#allocation7 + $0x30] sm:$0xff]
    %v91 = vld [vmem:[#allocation7 + $0x38] sm:$0xff]
    %v92 = vld [vmem:[#allocation7 + $0x40] sm:$0xff]
    %v93 = vld [vmem:[#allocation7 + $0x48] sm:$0xff]
    %v94 = vld [vmem:[#allocation7 + $0x50] sm:$0xff]
    %v95 = vld [vmem:[#allocation7 + $0x58] sm:$0xff]
    %v96 = vld [vmem:[#allocation7 + $0x60] sm:$0xff]
    %v97 = vld [vmem:[#allocation7 + $0x68] sm:$0xff]
    %v98 = vld [vmem:[#allocation7 + $0x70] sm:$0xff]
    %v99 = vld [vmem:[#allocation7 + $0x78] sm:$0xff]
    %v100 = vld [vmem:[#allocation5] sm:$0xff]
    %v101 = vld [vmem:[#allocation5 + $0x8] sm:$0xff]
    %v103 = vlaneseq
    %v104 = vshrl.u32 %v103, 7
    %v105 = vsub.s32 0, %v104
    %v106 = vrot.slane %v81, %v105
    %vm108 = vcmask 130048
    %v110 = vsel %vm108, %v80, 0
    %112 = vmatprep.subr.mxu0 0.0
    %113 = vmatpush1.msra.mxu0 0.0
    %114 = vmatprep.subr.mxu0 0.0
    %115 = vmatpush1.msra.mxu0 0.0
    %116 = vmatprep.subr.mxu0 0.0
    %117 = vmatpush1.msra.mxu0 0.0
    %118 = vmatprep.subr.mxu0 0.0
    %119 = vmatpush1.msra.mxu0 0.0
    %120 = vmatprep.subr.mxu0 0.0
    %121 = vmatpush1.msra.mxu0 0.0
    %122 = vmatprep.subr.mxu0 0.0
    %123 = vmatpush1.msra.mxu0 0.0
    %124 = vmatprep.subr.mxu0 0.0
    %125 = vmatpush1.msra.mxu0 0.0
    %126 = vmatprep.subr.mxu0 0.0
    %127 = vmatpush1.msra.mxu0 0.0
    %128 = vmatprep.subr.mxu0 0.0
    %129 = vmatpush1.msra.mxu0 0.0
    %130 = vmatprep.subr.mxu0 0.0
    %131 = vmatpush1.msra.mxu0 0.0
    %132 = vmatprep.subr.mxu0 0.0
    %133 = vmatpush1.msra.mxu0 0.0
    %134 = vmatprep.subr.mxu0 0.0
    %135 = vmatpush1.msra.mxu0 0.0
    %136 = vmatprep.subr.mxu0 0.0
    %137 = vmatpush1.msra.mxu0 0.0
    %138 = vmatprep.subr.mxu0 0.0
    %139 = vmatpush1.msra.mxu0 0.0
    %140 = vmatprep.subr.mxu0 0.0
    %141 = vmatpush1.msra.mxu0 %v101
    %142 = vmatprep.subr.mxu0 0.0
    %143 = vmatpush1.msra.mxu0 %v100
    %144 = vmatprep.subr.mxu0 0.0
    %145 = vmatpush2.msra.mxu0 0.0
    %146 = vmatprep.subr.mxu0 0.0
    %147 = vmatpush2.msra.mxu0 0.0
    %148 = vmatprep.subr.mxu0 0.0
    %149 = vmatpush2.msra.mxu0 0.0
    %150 = vmatprep.subr.mxu0 0.0
    %151 = vmatpush2.msra.mxu0 0.0
    %152 = vmatprep.subr.mxu0 0.0
    %153 = vmatpush2.msra.mxu0 0.0
    %154 = vmatprep.subr.mxu0 0.0
    %155 = vmatpush2.msra.mxu0 0.0
    %156 = vmatprep.subr.mxu0 0.0
    %157 = vmatpush2.msra.mxu0 0.0
    %158 = vmatprep.subr.mxu0 0.0
    %159 = vmatpush2.msra.mxu0 0.0
    %160 = vmatprep.subr.mxu0 0.0
    %161 = vmatpush2.msra.mxu0 0.0
    %162 = vmatprep.subr.mxu0 0.0
    %163 = vmatpush2.msra.mxu0 0.0
    %164 = vmatprep.subr.mxu0 0.0
    %165 = vmatpush2.msra.mxu0 0.0
    %166 = vmatprep.subr.mxu0 0.0
    %167 = vmatpush2.msra.mxu0 0.0
    %168 = vmatprep.subr.mxu0 0.0
    %169 = vmatpush2.msra.mxu0 0.0
    %170 = vmatprep.subr.mxu0 0.0
    %171 = vmatpush2.msra.mxu0 0.0
    %172 = vmatprep.subr.mxu0 0.0
    %173 = vmatpush2.msra.mxu0 0.0
    %174 = vmatprep.subr.mxu0 0.0
    %175 = vmatpush2.msra.mxu0 0.0
    %176 = vmatprep.mubr.f32.mxu0 0.0
    %177 = vmatmul.mubr.f32.gmra.mxu0 %v110
    %v178 = vpop.f32.mrf.mxu0
    %v179 = vadd.f32 %v106, %v178
    %v180 = vpop.f32.mrf.mxu0
    %181 = vdwg.mxu0
    %v182 = vmax.f32 %v179, 0.0
    %v184 = vlaneseq
    %v185 = vshrl.u32 %v184, 7
    %v186 = vsub.s32 0, %v185
    %v187 = vrot.slane %v82, %v186
    %189 = vmatprep.subr.mxu0 0.0
    %190 = vmatpush1.msra.mxu0 %v99
    %191 = vmatprep.subr.mxu0 0.0
    %192 = vmatpush1.msra.mxu0 %v98
    %193 = vmatprep.subr.mxu0 0.0
    %194 = vmatpush1.msra.mxu0 %v97
    %195 = vmatprep.subr.mxu0 0.0
    %196 = vmatpush1.msra.mxu0 %v96
    %197 = vmatprep.subr.mxu0 0.0
    %198 = vmatpush1.msra.mxu0 %v95
    %199 = vmatprep.subr.mxu0 0.0
    %200 = vmatpush1.msra.mxu0 %v94
    %201 = vmatprep.subr.mxu0 0.0
    %202 = vmatpush1.msra.mxu0 %v93
    %203 = vmatprep.subr.mxu0 0.0
    %204 = vmatpush1.msra.mxu0 %v92
    %205 = vmatprep.subr.mxu0 0.0
    %206 = vmatpush1.msra.mxu0 %v91
    %207 = vmatprep.subr.mxu0 0.0
    %208 = vmatpush1.msra.mxu0 %v90
    %209 = vmatprep.subr.mxu0 0.0
    %210 = vmatpush1.msra.mxu0 %v89
    %211 = vmatprep.subr.mxu0 0.0
    %212 = vmatpush1.msra.mxu0 %v88
    %213 = vmatprep.subr.mxu0 0.0
    %214 = vmatpush1.msra.mxu0 %v87
    %215 = vmatprep.subr.mxu0 0.0
    %216 = vmatpush1.msra.mxu0 %v86
    %217 = vmatprep.subr.mxu0 0.0
    %218 = vmatpush1.msra.mxu0 %v85
    %219 = vmatprep.subr.mxu0 0.0
    %220 = vmatpush1.msra.mxu0 %v84
    %221 = vmatprep.subr.mxu0 0.0
    %222 = vmatpush2.msra.mxu0 0.0
    %223 = vmatprep.subr.mxu0 0.0
    %224 = vmatpush2.msra.mxu0 0.0
    %225 = vmatprep.subr.mxu0 0.0
    %226 = vmatpush2.msra.mxu0 0.0
    %227 = vmatprep.subr.mxu0 0.0
    %228 = vmatpush2.msra.mxu0 0.0
    %229 = vmatprep.subr.mxu0 0.0
    %230 = vmatpush2.msra.mxu0 0.0
    %231 = vmatprep.subr.mxu0 0.0
    %232 = vmatpush2.msra.mxu0 0.0
    %233 = vmatprep.subr.mxu0 0.0
    %234 = vmatpush2.msra.mxu0 0.0
    %235 = vmatprep.subr.mxu0 0.0
    %236 = vmatpush2.msra.mxu0 0.0
    %237 = vmatprep.subr.mxu0 0.0
    %238 = vmatpush2.msra.mxu0 0.0
    %239 = vmatprep.subr.mxu0 0.0
    %240 = vmatpush2.msra.mxu0 0.0
    %241 = vmatprep.subr.mxu0 0.0
    %242 = vmatpush2.msra.mxu0 0.0
    %243 = vmatprep.subr.mxu0 0.0
    %244 = vmatpush2.msra.mxu0 0.0
    %245 = vmatprep.subr.mxu0 0.0
    %246 = vmatpush2.msra.mxu0 0.0
    %247 = vmatprep.subr.mxu0 0.0
    %248 = vmatpush2.msra.mxu0 0.0
    %249 = vmatprep.subr.mxu0 0.0
    %250 = vmatpush2.msra.mxu0 0.0
    %251 = vmatprep.subr.mxu0 0.0
    %252 = vmatpush2.msra.mxu0 0.0
    %253 = vmatprep.mubr.f32.mxu0 0.0
    %254 = vmatmul.mubr.f32.gmra.mxu0 %v182
    %v255 = vpop.f32.mrf.mxu0
    %v256 = vadd.f32 %v187, %v255
    %v257 = vpop.f32.mrf.mxu0
    %258 = vdwg.mxu0
    %v259 = vmax.f32 %v256, 0.0
    %260 = vmatprep.subr.mxu0 0.0
    %261 = vmatpush1.msra.mxu0 %v99
    %262 = vmatprep.subr.mxu0 0.0
    %263 = vmatpush1.msra.mxu0 %v98
    %264 = vmatprep.subr.mxu0 0.0
    %265 = vmatpush1.msra.mxu0 %v97
    %266 = vmatprep.subr.mxu0 0.0
    %267 = vmatpush1.msra.mxu0 %v96
    %268 = vmatprep.subr.mxu0 0.0
    %269 = vmatpush1.msra.mxu0 %v95
    %270 = vmatprep.subr.mxu0 0.0
    %271 = vmatpush1.msra.mxu0 %v94
    %272 = vmatprep.subr.mxu0 0.0
    %273 = vmatpush1.msra.mxu0 %v93
    %274 = vmatprep.subr.mxu0 0.0
    %275 = vmatpush1.msra.mxu0 %v92
    %276 = vmatprep.subr.mxu0 0.0
    %277 = vmatpush1.msra.mxu0 %v91
    %278 = vmatprep.subr.mxu0 0.0
    %279 = vmatpush1.msra.mxu0 %v90
    %280 = vmatprep.subr.mxu0 0.0
    %281 = vmatpush1.msra.mxu0 %v89
    %282 = vmatprep.subr.mxu0 0.0
    %283 = vmatpush1.msra.mxu0 %v88
    %284 = vmatprep.subr.mxu0 0.0
    %285 = vmatpush1.msra.mxu0 %v87
    %286 = vmatprep.subr.mxu0 0.0
    %287 = vmatpush1.msra.mxu0 %v86
    %288 = vmatprep.subr.mxu0 0.0
    %289 = vmatpush1.msra.mxu0 %v85
    %290 = vmatprep.subr.mxu0 0.0
    %291 = vmatpush1.msra.mxu0 %v84
    %292 = vmatprep.subr.mxu0 0.0
    %293 = vmatpush2.msra.mxu0 0.0
    %294 = vmatprep.subr.mxu0 0.0
    %295 = vmatpush2.msra.mxu0 0.0
    %296 = vmatprep.subr.mxu0 0.0
    %297 = vmatpush2.msra.mxu0 0.0
    %298 = vmatprep.subr.mxu0 0.0
    %299 = vmatpush2.msra.mxu0 0.0
    %300 = vmatprep.subr.mxu0 0.0
    %301 = vmatpush2.msra.mxu0 0.0
    %302 = vmatprep.subr.mxu0 0.0
    %303 = vmatpush2.msra.mxu0 0.0
    %304 = vmatprep.subr.mxu0 0.0
    %305 = vmatpush2.msra.mxu0 0.0
    %306 = vmatprep.subr.mxu0 0.0
    %307 = vmatpush2.msra.mxu0 0.0
    %308 = vmatprep.subr.mxu0 0.0
    %309 = vmatpush2.msra.mxu0 0.0
    %310 = vmatprep.subr.mxu0 0.0
    %311 = vmatpush2.msra.mxu0 0.0
    %312 = vmatprep.subr.mxu0 0.0
    %313 = vmatpush2.msra.mxu0 0.0
    %314 = vmatprep.subr.mxu0 0.0
    %315 = vmatpush2.msra.mxu0 0.0
    %316 = vmatprep.subr.mxu0 0.0
    %317 = vmatpush2.msra.mxu0 0.0
    %318 = vmatprep.subr.mxu0 0.0
    %319 = vmatpush2.msra.mxu0 0.0
    %320 = vmatprep.subr.mxu0 0.0
    %321 = vmatpush2.msra.mxu0 0.0
    %322 = vmatprep.subr.mxu0 0.0
    %323 = vmatpush2.msra.mxu0 0.0
    %324 = vmatprep.mubr.f32.mxu0 0.0
    %325 = vmatmul.mubr.f32.gmra.mxu0 %v259
    %v326 = vpop.f32.mrf.mxu0
    %v327 = vadd.f32 %v187, %v326
    %v328 = vpop.f32.mrf.mxu0
    %329 = vdwg.mxu0
    %v330 = vmax.f32 %v327, 0.0
    %331 = vmatprep.subr.mxu0 0.0
    %332 = vmatpush1.msra.mxu0 %v99
    %333 = vmatprep.subr.mxu0 0.0
    %334 = vmatpush1.msra.mxu0 %v98
    %335 = vmatprep.subr.mxu0 0.0
    %336 = vmatpush1.msra.mxu0 %v97
    %337 = vmatprep.subr.mxu0 0.0
    %338 = vmatpush1.msra.mxu0 %v96
    %339 = vmatprep.subr.mxu0 0.0
    %340 = vmatpush1.msra.mxu0 %v95
    %341 = vmatprep.subr.mxu0 0.0
    %342 = vmatpush1.msra.mxu0 %v94
    %343 = vmatprep.subr.mxu0 0.0
    %344 = vmatpush1.msra.mxu0 %v93
    %345 = vmatprep.subr.mxu0 0.0
    %346 = vmatpush1.msra.mxu0 %v92
    %347 = vmatprep.subr.mxu0 0.0
    %348 = vmatpush1.msra.mxu0 %v91
    %349 = vmatprep.subr.mxu0 0.0
    %350 = vmatpush1.msra.mxu0 %v90
    %351 = vmatprep.subr.mxu0 0.0
    %352 = vmatpush1.msra.mxu0 %v89
    %353 = vmatprep.subr.mxu0 0.0
    %354 = vmatpush1.msra.mxu0 %v88
    %355 = vmatprep.subr.mxu0 0.0
    %356 = vmatpush1.msra.mxu0 %v87
    %357 = vmatprep.subr.mxu0 0.0
    %358 = vmatpush1.msra.mxu0 %v86
    %359 = vmatprep.subr.mxu0 0.0
    %360 = vmatpush1.msra.mxu0 %v85
    %361 = vmatprep.subr.mxu0 0.0
    %362 = vmatpush1.msra.mxu0 %v84
    %363 = vmatprep.subr.mxu0 0.0
    %364 = vmatpush2.msra.mxu0 0.0
    %365 = vmatprep.subr.mxu0 0.0
    %366 = vmatpush2.msra.mxu0 0.0
    %367 = vmatprep.subr.mxu0 0.0
    %368 = vmatpush2.msra.mxu0 0.0
    %369 = vmatprep.subr.mxu0 0.0
    %370 = vmatpush2.msra.mxu0 0.0
    %371 = vmatprep.subr.mxu0 0.0
    %372 = vmatpush2.msra.mxu0 0.0
    %373 = vmatprep.subr.mxu0 0.0
    %374 = vmatpush2.msra.mxu0 0.0
    %375 = vmatprep.subr.mxu0 0.0
    %376 = vmatpush2.msra.mxu0 0.0
    %377 = vmatprep.subr.mxu0 0.0
    %378 = vmatpush2.msra.mxu0 0.0
    %379 = vmatprep.subr.mxu0 0.0
    %380 = vmatpush2.msra.mxu0 0.0
    %381 = vmatprep.subr.mxu0 0.0
    %382 = vmatpush2.msra.mxu0 0.0
    %383 = vmatprep.subr.mxu0 0.0
    %384 = vmatpush2.msra.mxu0 0.0
    %385 = vmatprep.subr.mxu0 0.0
    %386 = vmatpush2.msra.mxu0 0.0
    %387 = vmatprep.subr.mxu0 0.0
    %388 = vmatpush2.msra.mxu0 0.0
    %389 = vmatprep.subr.mxu0 0.0
    %390 = vmatpush2.msra.mxu0 0.0
    %391 = vmatprep.subr.mxu0 0.0
    %392 = vmatpush2.msra.mxu0 0.0
    %393 = vmatprep.subr.mxu0 0.0
    %394 = vmatpush2.msra.mxu0 0.0
    %395 = vmatprep.mubr.f32.mxu0 0.0
    %396 = vmatmul.mubr.f32.gmra.mxu0 %v330
    %v397 = vpop.f32.mrf.mxu0
    %v398 = vadd.f32 %v187, %v397
    %v399 = vpop.f32.mrf.mxu0
    %400 = vdwg.mxu0
    %v401 = vmax.f32 %v398, 0.0
    %v402 = vld [vmem:[#allocation8] sm:$0xff]
    %v403 = vld [vmem:[#allocation8 + $0x8] sm:$0xff]
    %v404 = vld [vmem:[#allocation8 + $0x10] sm:$0xff]
    %v405 = vld [vmem:[#allocation8 + $0x18] sm:$0xff]
    %v406 = vld [vmem:[#allocation8 + $0x20] sm:$0xff]
    %v407 = vld [vmem:[#allocation8 + $0x28] sm:$0xff]
    %v408 = vld [vmem:[#allocation8 + $0x30] sm:$0xff]
    %v409 = vld [vmem:[#allocation8 + $0x38] sm:$0xff]
    %v410 = vld [vmem:[#allocation8 + $0x40] sm:$0xff]
    %v411 = vld [vmem:[#allocation8 + $0x48] sm:$0xff]
    %v412 = vld [vmem:[#allocation8 + $0x50] sm:$0xff]
    %v413 = vld [vmem:[#allocation8 + $0x58] sm:$0xff]
    %v414 = vld [vmem:[#allocation8 + $0x60] sm:$0xff]
    %v415 = vld [vmem:[#allocation8 + $0x68] sm:$0xff]
    %v416 = vld [vmem:[#allocation8 + $0x70] sm:$0xff]
    %v417 = vld [vmem:[#allocation8 + $0x78] sm:$0xff]
    %v419 = vlaneseq
    %v420 = vshrl.u32 %v419, 7
    %v421 = vsub.s32 0, %v420
    %v422 = vrot.slane %v83, %v421
    %424 = vmatprep.subr.mxu0 0.0
    %425 = vmatpush1.msra.mxu0 %v417
    %426 = vmatprep.subr.mxu0 0.0
    %427 = vmatpush1.msra.mxu0 %v416
    %428 = vmatprep.subr.mxu0 0.0
    %429 = vmatpush1.msra.mxu0 %v415
    %430 = vmatprep.subr.mxu0 0.0
    %431 = vmatpush1.msra.mxu0 %v414
    %432 = vmatprep.subr.mxu0 0.0
    %433 = vmatpush1.msra.mxu0 %v413
    %434 = vmatprep.subr.mxu0 0.0
    %435 = vmatpush1.msra.mxu0 %v412
    %436 = vmatprep.subr.mxu0 0.0
    %437 = vmatpush1.msra.mxu0 %v411
    %438 = vmatprep.subr.mxu0 0.0
    %439 = vmatpush1.msra.mxu0 %v410
    %440 = vmatprep.subr.mxu0 0.0
    %441 = vmatpush1.msra.mxu0 %v409
    %442 = vmatprep.subr.mxu0 0.0
    %443 = vmatpush1.msra.mxu0 %v408
    %444 = vmatprep.subr.mxu0 0.0
    %445 = vmatpush1.msra.mxu0 %v407
    %446 = vmatprep.subr.mxu0 0.0
    %447 = vmatpush1.msra.mxu0 %v406
    %448 = vmatprep.subr.mxu0 0.0
    %449 = vmatpush1.msra.mxu0 %v405
    %450 = vmatprep.subr.mxu0 0.0
    %451 = vmatpush1.msra.mxu0 %v404
    %452 = vmatprep.subr.mxu0 0.0
    %453 = vmatpush1.msra.mxu0 %v403
    %454 = vmatprep.subr.mxu0 0.0
    %455 = vmatpush1.msra.mxu0 %v402
    %456 = vmatprep.subr.mxu0 0.0
    %457 = vmatpush2.msra.mxu0 0.0
    %458 = vmatprep.subr.mxu0 0.0
    %459 = vmatpush2.msra.mxu0 0.0
    %460 = vmatprep.subr.mxu0 0.0
    %461 = vmatpush2.msra.mxu0 0.0
    %462 = vmatprep.subr.mxu0 0.0
    %463 = vmatpush2.msra.mxu0 0.0
    %464 = vmatprep.subr.mxu0 0.0
    %465 = vmatpush2.msra.mxu0 0.0
    %466 = vmatprep.subr.mxu0 0.0
    %467 = vmatpush2.msra.mxu0 0.0
    %468 = vmatprep.subr.mxu0 0.0
    %469 = vmatpush2.msra.mxu0 0.0
    %470 = vmatprep.subr.mxu0 0.0
    %471 = vmatpush2.msra.mxu0 0.0
    %472 = vmatprep.subr.mxu0 0.0
    %473 = vmatpush2.msra.mxu0 0.0
    %474 = vmatprep.subr.mxu0 0.0
    %475 = vmatpush2.msra.mxu0 0.0
    %476 = vmatprep.subr.mxu0 0.0
    %477 = vmatpush2.msra.mxu0 0.0
    %478 = vmatprep.subr.mxu0 0.0
    %479 = vmatpush2.msra.mxu0 0.0
    %480 = vmatprep.subr.mxu0 0.0
    %481 = vmatpush2.msra.mxu0 0.0
    %482 = vmatprep.subr.mxu0 0.0
    %483 = vmatpush2.msra.mxu0 0.0
    %484 = vmatprep.subr.mxu0 0.0
    %485 = vmatpush2.msra.mxu0 0.0
    %486 = vmatprep.subr.mxu0 0.0
    %487 = vmatpush2.msra.mxu0 0.0
    %488 = vmatprep.mubr.f32.mxu0 0.0
    %489 = vmatmul.mubr.f32.gmra.mxu0 %v401
    %v490 = vpop.f32.mrf.mxu0
    %v491 = vadd.f32 %v422, %v490
    %v492 = vpop.f32.mrf.mxu0
    %493 = vdwg.mxu0
    %494 = vst [vmem:[#allocation10] sm:$0xff] %v491
    // Predicated region
    $region46: #{tpu_custom_call.1} parent=1 // pred_check
      _
    $region47: #{tpu_custom_call.1} parent=1 // pred_check_branch
      %496 = sbr.rel (0) target = $region49
    $region48: #{tpu_custom_call.1} parent=1 // pred_region
      %s498 = ssub.s32 128, 128
      %499 = vsyncadd [#allocation4], %s498
      %s501 = sshll.u32 [#allocation10], 4
      %s502 = int_to_ptr.vmem [resolvable:$true] %s501
      %504 = dma.vmem_to_hbm [thread:$0]  %s502, 128, %s7, [#allocation4]
    $region49: #{tpu_custom_call.1} parent=1 // pred_fallthru
      _
    // Predicated region
    $region50: #{tpu_custom_call.1} parent=1 // pred_check
      _
    $region51: #{tpu_custom_call.1} parent=1 // pred_check_branch
      %506 = sbr.rel (0) target = $region53
    $region52: #{tpu_custom_call.1} parent=1 // pred_region
      %507 = dma.done [#allocation4], 128
    $region53: #{tpu_custom_call.1} parent=1 // pred_fallthru
      _
    %508 = vsyncpa [#allocation3], 1
    %509 = vsyncpa [#allocation6], 1
    %510 = vsyncpa [#allocation9], 1
    %511 = vsyncpa [#allocation4], 1

</llo_original>
